<compile_context>
chip_gen: v7x
topology: tpu7x:2x2x1
jax: 0.10.0
libtpu: 0.0.40
codegen_flags: <defaults>
</compile_context>

<pallas_src>
import jax
import jax.numpy as jnp
from jax.experimental import pallas as pl
from jax.experimental.pallas import tpu as pltpu

_LANES = 128                   # vreg lane width
_TARGET_BLOCK_BYTES = 1 << 20  # ~1 MiB per array per grid step


def _param_loss_kernel(out_ref, gt_ref, valid_ref, loss_ref):
    # Elementwise hot path; `valid` may be a narrower dtype and/or a
    # (tile_B, 1) row mask -> cast + broadcast in-register (free VALU work).
    v = valid_ref[...].astype(out_ref.dtype)
    loss_ref[...] = jnp.abs(out_ref[...] - gt_ref[...]) * v


def _sublane_granularity(*dtypes):
    # 8 rows for 4-byte dtypes, 16 for 2-byte, 32 for 1-byte.
    g = 8
    for dt in dtypes:
        g = max(g, 32 // max(1, jnp.dtype(dt).itemsize))
    return g


def _param_loss_2d(param_out, param_gt, valid):
    """Lane-dense 2-D path: D % 128 == 0, valid is (B, 1) or (B, D)."""
    B, D = param_out.shape
    itemsize = jnp.dtype(param_out.dtype).itemsize
    sub = _sublane_granularity(param_out.dtype, valid.dtype)

    tile_b = max(sub, (_TARGET_BLOCK_BYTES // (D * itemsize)) // sub * sub)
    if tile_b >= B:
        tile_b = B
        grid = 1
    else:
        grid = pl.cdiv(B, tile_b)

    dv = valid.shape[1]
    spec_p = pl.BlockSpec((tile_b, D), lambda i: (i, 0))
    spec_v = pl.BlockSpec((tile_b, dv), lambda i: (i, 0))

    return pl.pallas_call(
        _param_loss_kernel,
        out_shape=jax.ShapeDtypeStruct((B, D), param_out.dtype),
        grid_spec=pl.GridSpec(
            grid=(grid,),
            in_specs=[spec_p, spec_p, spec_v],
            out_specs=spec_p,
        ),
        compiler_params=pltpu.CompilerParams(
            dimension_semantics=("parallel",),
        ),
    )(param_out, param_gt, valid)


def _param_loss_flat(param_out, param_gt, valid):
    """Generic path: flatten to a (rows, 128) lane-dense slab."""
    dtype = param_out.dtype
    shape = param_out.shape
    n = param_out.size
    itemsize = jnp.dtype(dtype).itemsize
    sub = _sublane_granularity(dtype, valid.dtype)

    padded = (n % _LANES) != 0
    if padded:
        chunk = _LANES * sub
        padded_n = ((n + chunk - 1) // chunk) * chunk
    else:
        padded_n = n
    rows = padded_n // _LANES

    tile_rows = max(sub, (_TARGET_BLOCK_BYTES // (_LANES * itemsize)) // sub * sub)
    if tile_rows >= rows:
        tile_rows = rows
        grid = 1
    else:
        grid = pl.cdiv(rows, tile_rows)

    def _prep(x):
        x = x.reshape(-1)
        if padded:
            x = jnp.pad(x, (0, padded_n - n))
        return x.reshape(rows, _LANES)

    a2d = _prep(param_out)
    b2d = _prep(param_gt)
    v2d = _prep(valid)

    spec = pl.BlockSpec((tile_rows, _LANES), lambda i: (i, 0))

    loss2d = pl.pallas_call(
        _param_loss_kernel,
        out_shape=jax.ShapeDtypeStruct((rows, _LANES), dtype),
        grid_spec=pl.GridSpec(
            grid=(grid,),
            in_specs=[spec, spec, spec],
            out_specs=spec,
        ),
        compiler_params=pltpu.CompilerParams(
            dimension_semantics=("parallel",),
        ),
    )(a2d, b2d, v2d)

    flat = loss2d.reshape(-1)
    if padded:
        flat = flat[:n]
    return flat.reshape(shape)


def param_loss(param_out, param_gt, valid):
    """Pallas implementation of ParamLoss.forward.

    Supports PyTorch-style broadcasting of `param_gt` / `valid` against
    `param_out` (e.g. a (B, 1) validity mask).
    """
    dtype = param_out.dtype
    shape = param_out.shape

    if param_gt.shape != shape:
        param_gt = jnp.broadcast_to(param_gt, shape)
    if param_gt.dtype != dtype:
        param_gt = param_gt.astype(dtype)

    # Keep `valid` in its narrow natural dtype (cast happens inside the
    # kernel); bool is re-tagged as int8 (same storage size, simpler layout).
    if valid.dtype == jnp.bool_:
        valid = valid.astype(jnp.int8)

    # Path A: lane-dense 2-D layout with the row mask broadcast in-kernel
    # (no HBM materialization of the broadcast).
    if (
        param_out.ndim == 2
        and shape[1] % _LANES == 0
        and shape[1] * jnp.dtype(dtype).itemsize * 8 <= _TARGET_BLOCK_BYTES
        and valid.ndim == 2
        and valid.shape[0] == shape[0]
        and valid.shape[1] in (1, shape[1])
    ):
        return _param_loss_2d(param_out, param_gt, valid)

    # Path B: generic flattened slab (broadcast of valid materialized only if
    # its shape really differs).
    if valid.shape != shape:
        valid = jnp.broadcast_to(valid, shape)
    return _param_loss_flat(param_out, param_gt, valid)


if __name__ == "__main__":
    key = jax.random.PRNGKey(0)
    k1, k2, k3, k4, k5, k6, k7 = jax.random.split(key, 7)

    # 1) Small SMPL-like shapes: batch=8, param_dim=72 (unaligned -> padded path).
    B, D = 8, 72
    param_out = jax.random.normal(k1, (B, D), dtype=jnp.float32)
    param_gt = jax.random.normal(k2, (B, D), dtype=jnp.float32)
    valid = (jax.random.uniform(k3, (B, D)) > 0.3).astype(jnp.float32)
    loss = param_loss(param_out, param_gt, valid)
    jax.block_until_ready(loss)
    ref = jnp.abs(param_out - param_gt) * valid
    assert loss.shape == (B, D)
    assert jnp.allclose(loss, ref, atol=1e-6, rtol=1e-6)

    # 2) Broadcast (B, 1) valid mask on an unaligned D (falls to flat path).
    valid_row = (jax.random.uniform(k4, (B, 1)) > 0.3).astype(jnp.float32)
    loss_b = param_loss(param_out, param_gt, valid_row)
    jax.block_until_ready(loss_b)
    ref_b = jnp.abs(param_out - param_gt) * valid_row
    assert jnp.allclose(loss_b, ref_b, atol=1e-6, rtol=1e-6)

    # 3) Lane-dense 2-D path with in-kernel broadcast of a (B, 1) mask.
    B3, D3 = 16, 256
    p3 = jax.random.normal(k5, (B3, D3), dtype=jnp.float32)
    g3 = jax.random.normal(k6, (B3, D3), dtype=jnp.float32)
    v3 = (jax.random.uniform(k7, (B3, 1)) > 0.5).astype(jnp.float32)
    loss3 = param_loss(p3, g3, v3)
    jax.block_until_ready(loss3)
    ref3 = jnp.abs(p3 - g3) * v3
    assert jnp.allclose(loss3, ref3, atol=1e-6, rtol=1e-6)

    # 4) Aligned flat path (no pad / no slice) with a bool (-> int8) mask.
    B4, D4 = 64, 128
    p4 = jax.random.normal(k2, (B4, D4), dtype=jnp.float32)
    g4 = jax.random.normal(k3, (B4, D4), dtype=jnp.float32)
    v4 = jax.random.uniform(k4, (B4, D4)) > 0.5
    loss4 = param_loss(p4, g4, v4)
    jax.block_until_ready(loss4)
    ref4 = jnp.abs(p4 - g4) * v4.astype(jnp.float32)
    assert jnp.allclose(loss4, ref4, atol=1e-6, rtol=1e-6)

    print("KERNEL_OK")
</pallas_src>

<mosaic_0001>
module attributes {stable_mosaic.version = 11 : i64} {
  func.func @_param_loss_kernel(%arg0: i32, %arg1: memref<8x128xf32, #tpu.memory_space<vmem>>, %arg2: memref<8x128xf32, #tpu.memory_space<vmem>>, %arg3: memref<8x128xf32, #tpu.memory_space<vmem>>, %arg4: memref<8x128xf32, #tpu.memory_space<vmem>>) attributes {dimension_semantics = [#tpu.dimension_semantics<parallel>], iteration_bounds = array<i64: 1>, scalar_prefetch = 0 : i64, scratch_operands = 0 : i64, tpu.core_type = #tpu.core_type<tc>, window_params = [{transform_indices = @transform_0, window_bounds = array<i64: 8, 128>}, {transform_indices = @transform_1, window_bounds = array<i64: 8, 128>}, {transform_indices = @transform_2, window_bounds = array<i64: 8, 128>}, {transform_indices = @transform_3, window_bounds = array<i64: 8, 128>}]} {
    %c0 = arith.constant 0 : index
    %c0_0 = arith.constant 0 : index
    %0 = vector.load %arg3[%c0, %c0_0] : memref<8x128xf32, #tpu.memory_space<vmem>>, vector<8x128xf32>
    %c0_1 = arith.constant 0 : index
    %c0_2 = arith.constant 0 : index
    %1 = vector.load %arg1[%c0_1, %c0_2] : memref<8x128xf32, #tpu.memory_space<vmem>>, vector<8x128xf32>
    %c0_3 = arith.constant 0 : index
    %c0_4 = arith.constant 0 : index
    %2 = vector.load %arg2[%c0_3, %c0_4] : memref<8x128xf32, #tpu.memory_space<vmem>>, vector<8x128xf32>
    %3 = arith.subf %1, %2 : vector<8x128xf32>
    %4 = math.absf %3 : vector<8x128xf32>
    %5 = arith.mulf %4, %0 : vector<8x128xf32>
    %c0_5 = arith.constant 0 : index
    %c0_6 = arith.constant 0 : index
    %6 = vector.load %arg4[%c0_5, %c0_6] : memref<8x128xf32, #tpu.memory_space<vmem>>, vector<8x128xf32>
    tpu.vector_store %arg4[%c0_5, %c0_6], %5 {strides = array<i32>} : memref<8x128xf32, #tpu.memory_space<vmem>>, vector<8x128xf32>,
    return
  }
  func.func @transform_0(%arg0: i32) -> (i32, i32) {
    %c0_i32 = arith.constant 0 : i32
    %c0_i32_0 = arith.constant 0 : i32
    return %arg0, %c0_i32 : i32, i32
  }
  func.func @transform_1(%arg0: i32) -> (i32, i32) {
    %c0_i32 = arith.constant 0 : i32
    %c0_i32_0 = arith.constant 0 : i32
    return %arg0, %c0_i32 : i32, i32
  }
  func.func @transform_2(%arg0: i32) -> (i32, i32) {
    %c0_i32 = arith.constant 0 : i32
    %c0_i32_0 = arith.constant 0 : i32
    return %arg0, %c0_i32 : i32, i32
  }
  func.func @transform_3(%arg0: i32) -> (i32, i32) {
    %c0_i32 = arith.constant 0 : i32
    %c0_i32_0 = arith.constant 0 : i32
    return %arg0, %c0_i32 : i32, i32
  }
}

</mosaic_0001>

<llo_original>
// kernel: tpu_custom_call.1
$region0: #{tpu_custom_call.1}
  #allocation0 [shape = 'u32[]', space=smem, size = 0x4, offset = 0x4, fixed_abs, tag = 'smem constant byte address 0x4 - core index']
  #allocation1 [shape = 'u32[144,128]{1,0:T(1,128)}', space=vmem, size = 0x12000, scoped, tag = 'internal scratch']
  %s0 = inlined_call_operand.hbm [shape: f32[8,128], index: 0, kind: input, shape index: {}]
  %s1 = inlined_call_operand.hbm [shape: f32[8,128], index: 1, kind: input, shape index: {}]
  %s2 = inlined_call_operand.hbm [shape: f32[8,128], index: 2, kind: input, shape index: {}]
  %s3 = inlined_call_operand.hbm [shape: f32[8,128], index: 3, kind: output, shape index: {}]
  %s4 = sld [smem:[#allocation0]]
  $region34: #{tpu_custom_call.1} parent=0
    _
  %s6 = ssub.s32 1, %s4
  %s7 = scalar_select 0, %s6, %s4
  $region1: #{tpu_custom_call.1} parent=0
    #allocation2 [shape = 'u8[4096]{0}', space=vmem, size = 0x1000, scoped, tag = 'input window, operand 0, single buffered']
    #allocation3 [shape = 's32[1]{0}', space=sflag, size = 0x4, scoped, tag = 'scoped memory for tpu_custom_call.1']
    #allocation4 [shape = 's32[1]{0}', space=sflag, size = 0x4, scoped, tag = 'scoped memory for tpu_custom_call.1']
    #allocation5 [shape = 'u8[4096]{0}', space=vmem, size = 0x1000, scoped, tag = 'input window, operand 1, single buffered']
    #allocation6 [shape = 's32[1]{0}', space=sflag, size = 0x4, scoped, tag = 'scoped memory for tpu_custom_call.1']
    #allocation7 [shape = 'u8[4096]{0}', space=vmem, size = 0x1000, scoped, tag = 'input window, operand 2, single buffered']
    #allocation8 [shape = 'u8[4096]{0}', space=vmem, size = 0x1000, scoped, tag = 'output window, operand 0, single buffered']
    %8 = vsyncpa [#allocation3], 0
    %9 = vsyncpa [#allocation6], 0
    %10 = vsyncpa [#allocation4], 0
    // Predicated region
    $region2: #{tpu_custom_call.1} parent=1 // pred_check
      _
    $region3: #{tpu_custom_call.1} parent=1 // pred_check_branch
      %12 = sbr.rel (0) target = $region5
    $region4: #{tpu_custom_call.1} parent=1 // pred_region
      %s14 = ssub.s32 128, 128
      %15 = vsyncadd [#allocation3], %s14
      %s17 = sshll.u32 [#allocation2], 4
      %s18 = int_to_ptr.vmem [resolvable:$true] %s17
      %20 = dma.hbm_to_vmem [thread:$0]  %s0, 128, %s18, [#allocation3]
    $region5: #{tpu_custom_call.1} parent=1 // pred_fallthru
      _
    // Predicated region
    $region6: #{tpu_custom_call.1} parent=1 // pred_check
      _
    $region7: #{tpu_custom_call.1} parent=1 // pred_check_branch
      %22 = sbr.rel (0) target = $region9
    $region8: #{tpu_custom_call.1} parent=1 // pred_region
      %s24 = ssub.s32 128, 128
      %25 = vsyncadd [#allocation6], %s24
      %s27 = sshll.u32 [#allocation5], 4
      %s28 = int_to_ptr.vmem [resolvable:$true] %s27
      %30 = dma.hbm_to_vmem [thread:$0]  %s1, 128, %s28, [#allocation6]
    $region9: #{tpu_custom_call.1} parent=1 // pred_fallthru
      _
    // Predicated region
    $region10: #{tpu_custom_call.1} parent=1 // pred_check
      _
    $region11: #{tpu_custom_call.1} parent=1 // pred_check_branch
      %32 = sbr.rel (0) target = $region13
    $region12: #{tpu_custom_call.1} parent=1 // pred_region
      %s34 = ssub.s32 128, 128
      %35 = vsyncadd [#allocation6], %s34
      %s37 = sshll.u32 [#allocation7], 4
      %s38 = int_to_ptr.vmem [resolvable:$true] %s37
      %40 = dma.hbm_to_vmem [thread:$0]  %s2, 128, %s38, [#allocation6]
    $region13: #{tpu_custom_call.1} parent=1 // pred_fallthru
      _
    // Predicated region
    $region14: #{tpu_custom_call.1} parent=1 // pred_check
      _
    $region15: #{tpu_custom_call.1} parent=1 // pred_check_branch
      %42 = sbr.rel (0) target = $region17
    $region16: #{tpu_custom_call.1} parent=1 // pred_region
      %43 = dma.done [#allocation3], 128
    $region17: #{tpu_custom_call.1} parent=1 // pred_fallthru
      _
    // Predicated region
    $region18: #{tpu_custom_call.1} parent=1 // pred_check
      _
    $region19: #{tpu_custom_call.1} parent=1 // pred_check_branch
      %45 = sbr.rel (0) target = $region21
    $region20: #{tpu_custom_call.1} parent=1 // pred_region
      %46 = dma.done [#allocation6], 128
    $region21: #{tpu_custom_call.1} parent=1 // pred_fallthru
      _
    // Predicated region
    $region22: #{tpu_custom_call.1} parent=1 // pred_check
      _
    $region23: #{tpu_custom_call.1} parent=1 // pred_check_branch
      %48 = sbr.rel (0) target = $region25
    $region24: #{tpu_custom_call.1} parent=1 // pred_region
      %49 = dma.done [#allocation6], 128
    $region25: #{tpu_custom_call.1} parent=1 // pred_fallthru
      _
    %v50 = vld [vmem:[#allocation7] sm:$0xff]
    %v51 = vld [vmem:[#allocation2] sm:$0xff]
    %v52 = vld [vmem:[#allocation5] sm:$0xff]
    %v53 = vsub.f32 %v51, %v52
    %v54 = vand.u32 2147483647, %v53
    %v55 = vmul.f32 %v54, %v50
    %56 = vst [vmem:[#allocation8] sm:$0xff] %v55
    // Predicated region
    $region26: #{tpu_custom_call.1} parent=1 // pred_check
      _
    $region27: #{tpu_custom_call.1} parent=1 // pred_check_branch
      %58 = sbr.rel (0) target = $region29
    $region28: #{tpu_custom_call.1} parent=1 // pred_region
      %s60 = ssub.s32 128, 128
      %61 = vsyncadd [#allocation4], %s60
      %s63 = sshll.u32 [#allocation8], 4
      %s64 = int_to_ptr.vmem [resolvable:$true] %s63
      %66 = dma.vmem_to_hbm [thread:$0]  %s64, 128, %s3, [#allocation4]
    $region29: #{tpu_custom_call.1} parent=1 // pred_fallthru
      _
    // Predicated region
    $region30: #{tpu_custom_call.1} parent=1 // pred_check
      _
    $region31: #{tpu_custom_call.1} parent=1 // pred_check_branch
      %68 = sbr.rel (0) target = $region33
    $region32: #{tpu_custom_call.1} parent=1 // pred_region
      %69 = dma.done [#allocation4], 128
    $region33: #{tpu_custom_call.1} parent=1 // pred_fallthru
      _
    %70 = vsyncpa [#allocation3], 1
    %71 = vsyncpa [#allocation6], 1
    %72 = vsyncpa [#allocation4], 1

</llo_original>
